<compile_context>
chip_gen: v7x
topology: tpu7x:2x2x1
jax: 0.10.0
libtpu: 0.0.40
codegen_flags: <defaults>
</compile_context>

<pallas_src>
import functools

import jax
import jax.numpy as jnp
from jax.experimental import pallas as pl
from jax.experimental.pallas import tpu as pltpu


def _focal_loss_kernel(x_ref, t_ref, out_ref, *, alpha, gamma, num_class):
    # x_ref:  (BN, C, TR, 128) logits block
    # t_ref:  (BN, TR, 128)    int32 targets (-1 in padded lanes)
    # out_ref:(TR, 128)        per-lane loss accumulator (resident across inner axis)
    @pl.when(pl.program_id(2) == 0)
    def _():
        out_ref[...] = jnp.zeros_like(out_ref)

    tgt = t_ref[...]                                          # (BN, TR, 128) int32

    # Pass 1: per-lane max over class planes (dense VPU maxes, no XLU reduce).
    m = x_ref[:, 0, :, :].astype(jnp.float32)
    for c in range(1, num_class):
        m = jnp.maximum(m, x_ref[:, c, :, :].astype(jnp.float32))

    # Pass 2: fused sum-exp / target-logit gather / alpha gather.
    se = jnp.zeros_like(m)
    x_t = jnp.zeros_like(m)
    a_t = jnp.zeros_like(m)
    for c in range(num_class):
        xc = x_ref[:, c, :, :].astype(jnp.float32) - m
        se = se + jnp.exp(xc)
        mask = (tgt == c).astype(jnp.float32)
        x_t = x_t + mask * xc
        a_t = a_t + mask * float(alpha[c])        # scalar constant, no f32[C] capture

    # Reference-faithful pt/logpt: pt = softmax[target] + 1e-10, logpt = log(pt).
    pt = jnp.exp(x_t - jnp.log(se)) + 1e-10
    logpt = jnp.log(pt)

    u = 1.0 - pt
    g = float(gamma)
    if g.is_integer() and 0.0 <= g <= 16.0:
        # Integer gamma: repeated multiply on the VPU (no pow chain on the EUP,
        # no NaN when pt marginally exceeds 1 due to the +1e-10).
        w = jnp.ones_like(u)
        for _ in range(int(g)):
            w = w * u
    else:
        w = jnp.power(jnp.maximum(u, 0.0), g)

    loss = -(a_t * w) * logpt                     # (BN, TR, 128); padded lanes -> 0

    # Fold the batch-block planes (cheap VPU adds) and accumulate per-lane.
    acc = loss[0]
    for b in range(1, loss.shape[0]):
        acc = acc + loss[b]
    out_ref[...] += acc


def _round_up(x, m):
    return ((x + m - 1) // m) * m


def _choose_blocking(N, C, HW, *, budget_bytes=2 * 1024 * 1024, max_rows=1024):
    """Pick (BN, TR, R, SO, SI) for logits blocks of shape (BN, C, TR, 128)."""
    r_min = _round_up(pl.cdiv(HW, 128), 8)            # rows needed (mult of 8)
    bytes_per_row = C * 128 * 4
    tr_budget = max(8, (budget_bytes // bytes_per_row) // 8 * 8)
    tr_budget = min(tr_budget, max_rows)

    if r_min <= tr_budget:
        # Whole image fits in one spatial block -> fold batch rows instead.
        TR = r_min
        R = r_min
        bytes_per_batch_row = C * R * 128 * 4
        bn_cap = max(1, budget_bytes // bytes_per_batch_row)
        BN = 1
        for d in range(1, N + 1):
            if N % d == 0 and d <= bn_cap:
                BN = d
    else:
        TR = tr_budget
        R = _round_up(r_min, TR)                      # pad so TR divides R
        BN = 1

    NS = R // TR
    NB = N // BN
    # Split the spatial axis when only one batch block exists so both v7x
    # TensorCores get work (harmless on single-TC v5e/v6e).
    SO = 2 if (NB == 1 and NS >= 2 and NS % 2 == 0) else 1
    SI = NS // SO
    return BN, TR, R, SO, SI


def _normalize_alpha(alpha, num_class):
    vals = [float(v) for v in alpha]
    assert len(vals) == num_class
    s = sum(vals)
    return tuple(v / s for v in vals)


def focal_loss(x, target, alpha, *, gamma=2.0, size_average=True,
               block_bytes=2 * 1024 * 1024):
    """x: (N, C, H, W) logits; target: (N, H, W) int class ids."""
    # TODO(synk): smooth-label path and float/None alpha variants of the module
    # are not implemented (defaults smooth=None, list alpha are covered).
    N, C, H, W = x.shape
    HW = H * W
    M = N * HW

    alpha_norm = _normalize_alpha(alpha, C)           # alpha / alpha.sum() (static)

    BN, TR, R, SO, SI = _choose_blocking(N, C, HW, budget_bytes=block_bytes)
    NB = N // BN
    pad = R * 128 - HW

    logits = x.reshape(N, C, HW)                      # free NCHW reshape
    tgt = target.reshape(N, HW).astype(jnp.int32)
    if pad:
        logits = jnp.pad(logits, ((0, 0), (0, 0), (0, pad)))
        tgt = jnp.pad(tgt, ((0, 0), (0, pad)), constant_values=-1)
    logits = logits.reshape(N, C, R, 128)             # spatial on (sublane, lane)
    tgt = tgt.reshape(N, R, 128)

    kernel = functools.partial(
        _focal_loss_kernel, alpha=alpha_norm, gamma=float(gamma), num_class=C)

    partials = pl.pallas_call(
        kernel,
        out_shape=jax.ShapeDtypeStruct((NB, SO, TR, 128), jnp.float32),
        grid_spec=pltpu.PrefetchScalarGridSpec(
            num_scalar_prefetch=0,
            grid=(NB, SO, SI),
            in_specs=[
                pl.BlockSpec((BN, C, TR, 128),
                             lambda b, so, si: (b, 0, so * SI + si, 0)),
                pl.BlockSpec((BN, TR, 128),
                             lambda b, so, si: (b, so * SI + si, 0)),
            ],
            out_specs=pl.BlockSpec((None, None, TR, 128),
                                   lambda b, so, si: (b, so, 0, 0)),
        ),
        compiler_params=pltpu.CompilerParams(
            dimension_semantics=("parallel", "parallel", "arbitrary"),
            vmem_limit_bytes=48 * 1024 * 1024),
    )(logits, tgt)

    total = jnp.sum(partials)                         # padded lanes contribute 0
    if size_average:
        return total / jnp.float32(M)
    return total


def _focal_loss_ref(x, target, alpha, gamma=2.0):
    N, C, H, W = x.shape
    logits = jnp.transpose(x, (0, 2, 3, 1)).reshape(-1, C)
    p = jax.nn.softmax(logits, axis=1)
    t = target.reshape(-1).astype(jnp.int32)
    one_hot = jax.nn.one_hot(t, C, dtype=jnp.float32)
    alpha_v = jnp.asarray(alpha, jnp.float32)
    alpha_v = alpha_v / jnp.sum(alpha_v)
    pt = jnp.sum(one_hot * p, axis=1) + 1e-10
    loss = -alpha_v[t] * (1.0 - pt) ** gamma * jnp.log(pt)
    return jnp.mean(loss)


if __name__ == "__main__":
    num_class = 5
    alpha = [0.1825, 0.15, 0.235, 0.2375, 0.195]

    key = jax.random.PRNGKey(0)
    kx, kt = jax.random.split(key)
    # input: (batch=2, channels=num_class=5, spatial=16x16) NCHW logits
    x = jax.random.normal(kx, (2, num_class, 16, 16), dtype=jnp.float32)
    target = jax.random.randint(kt, (2, 16, 16), 0, num_class, dtype=jnp.int32)

    loss = focal_loss(x, target, alpha, gamma=2.0, size_average=True)
    loss = jax.block_until_ready(loss)

    ref = _focal_loss_ref(x, target, alpha, gamma=2.0)
    assert jnp.allclose(loss, ref, rtol=1e-5, atol=1e-6), (loss, ref)

    print("KERNEL_OK")
</pallas_src>

<mosaic_0001>
module attributes {stable_mosaic.version = 11 : i64} {
  func.func @_focal_loss_kernel(%arg0: i32, %arg1: i32, %arg2: i32, %arg3: memref<2x5x8x128xf32, #tpu.memory_space<vmem>>, %arg4: memref<2x8x128xi32, #tpu.memory_space<vmem>>, %arg5: memref<1x1x8x128xf32, #tpu.memory_space<vmem>>) attributes {dimension_semantics = [#tpu.dimension_semantics<parallel>, #tpu.dimension_semantics<parallel>, #tpu.dimension_semantics<arbitrary>], iteration_bounds = array<i64: 1, 1, 1>, scalar_prefetch = 0 : i64, scratch_operands = 0 : i64, tpu.core_type = #tpu.core_type<tc>, window_params = [{transform_indices = @transform_0, window_bounds = array<i64: 2, 5, 8, 128>}, {transform_indices = @transform_1, window_bounds = array<i64: 2, 8, 128>}, {transform_indices = @transform_2, window_bounds = array<i64: 1, 1, 8, 128>}]} {
    %c0_i32 = arith.constant 0 : i32
    %0 = arith.cmpi eq, %arg2, %c0_i32 : i32
    %1 = arith.extui %0 : i1 to i32
    %c0_i32_0 = arith.constant 0 : i32
    %2 = arith.cmpi ne, %1, %c0_i32_0 : i32
    scf.if %2 {
      %cst_59 = arith.constant 0.000000e+00 : f32
      %117 = vector.broadcast %cst_59 : f32 to vector<8x128xf32>
      %c0_60 = arith.constant 0 : index
      %c0_61 = arith.constant 0 : index
      %c0_62 = arith.constant 0 : index
      %c0_63 = arith.constant 0 : index
      %118 = vector.load %arg5[%c0_60, %c0_61, %c0_62, %c0_63] : memref<1x1x8x128xf32, #tpu.memory_space<vmem>>, vector<1x1x8x128xf32>
      %119 = vector.shape_cast %118 : vector<1x1x8x128xf32> to vector<8x128xf32>
      %120 = vector.shape_cast %117 : vector<8x128xf32> to vector<1x1x8x128xf32>
      tpu.vector_store %arg5[%c0_60, %c0_61, %c0_62, %c0_63], %120 {strides = array<i32>} : memref<1x1x8x128xf32, #tpu.memory_space<vmem>>, vector<1x1x8x128xf32>,
    } else {
    }
    %c0 = arith.constant 0 : index
    %c0_1 = arith.constant 0 : index
    %c0_2 = arith.constant 0 : index
    %3 = vector.load %arg4[%c0, %c0_1, %c0_2] : memref<2x8x128xi32, #tpu.memory_space<vmem>>, vector<2x8x128xi32>
    %c0_3 = arith.constant 0 : index
    %c0_4 = arith.constant 0 : index
    %c0_5 = arith.constant 0 : index
    %c0_6 = arith.constant 0 : index
    %4 = vector.load %arg3[%c0_3, %c0_4, %c0_5, %c0_6] : memref<2x5x8x128xf32, #tpu.memory_space<vmem>>, vector<2x1x8x128xf32>
    %5 = vector.shape_cast %4 : vector<2x1x8x128xf32> to vector<2x8x128xf32>
    %c0_7 = arith.constant 0 : index
    %c1 = arith.constant 1 : index
    %c0_8 = arith.constant 0 : index
    %c0_9 = arith.constant 0 : index
    %6 = vector.load %arg3[%c0_7, %c1, %c0_8, %c0_9] : memref<2x5x8x128xf32, #tpu.memory_space<vmem>>, vector<2x1x8x128xf32>
    %7 = vector.shape_cast %6 : vector<2x1x8x128xf32> to vector<2x8x128xf32>
    %8 = arith.maximumf %5, %7 : vector<2x8x128xf32>
    %c0_10 = arith.constant 0 : index
    %c2 = arith.constant 2 : index
    %c0_11 = arith.constant 0 : index
    %c0_12 = arith.constant 0 : index
    %9 = vector.load %arg3[%c0_10, %c2, %c0_11, %c0_12] : memref<2x5x8x128xf32, #tpu.memory_space<vmem>>, vector<2x1x8x128xf32>
    %10 = vector.shape_cast %9 : vector<2x1x8x128xf32> to vector<2x8x128xf32>
    %11 = arith.maximumf %8, %10 : vector<2x8x128xf32>
    %c0_13 = arith.constant 0 : index
    %c3 = arith.constant 3 : index
    %c0_14 = arith.constant 0 : index
    %c0_15 = arith.constant 0 : index
    %12 = vector.load %arg3[%c0_13, %c3, %c0_14, %c0_15] : memref<2x5x8x128xf32, #tpu.memory_space<vmem>>, vector<2x1x8x128xf32>
    %13 = vector.shape_cast %12 : vector<2x1x8x128xf32> to vector<2x8x128xf32>
    %14 = arith.maximumf %11, %13 : vector<2x8x128xf32>
    %c0_16 = arith.constant 0 : index
    %c4 = arith.constant 4 : index
    %c0_17 = arith.constant 0 : index
    %c0_18 = arith.constant 0 : index
    %15 = vector.load %arg3[%c0_16, %c4, %c0_17, %c0_18] : memref<2x5x8x128xf32, #tpu.memory_space<vmem>>, vector<2x1x8x128xf32>
    %16 = vector.shape_cast %15 : vector<2x1x8x128xf32> to vector<2x8x128xf32>
    %17 = arith.maximumf %14, %16 : vector<2x8x128xf32>
    %cst = arith.constant 0.000000e+00 : f32
    %18 = vector.broadcast %cst : f32 to vector<2x8x128xf32>
    %cst_19 = arith.constant 0.000000e+00 : f32
    %19 = vector.broadcast %cst_19 : f32 to vector<2x8x128xf32>
    %cst_20 = arith.constant 0.000000e+00 : f32
    %20 = vector.broadcast %cst_20 : f32 to vector<2x8x128xf32>
    %c0_21 = arith.constant 0 : index
    %c0_22 = arith.constant 0 : index
    %c0_23 = arith.constant 0 : index
    %c0_24 = arith.constant 0 : index
    %21 = vector.load %arg3[%c0_21, %c0_22, %c0_23, %c0_24] : memref<2x5x8x128xf32, #tpu.memory_space<vmem>>, vector<2x1x8x128xf32>
    %22 = vector.shape_cast %21 : vector<2x1x8x128xf32> to vector<2x8x128xf32>
    %23 = arith.subf %22, %17 : vector<2x8x128xf32>
    %24 = math.exp %23 : vector<2x8x128xf32>
    %25 = arith.addf %18, %24 : vector<2x8x128xf32>
    %c0_i32_25 = arith.constant 0 : i32
    %26 = vector.broadcast %c0_i32_25 : i32 to vector<2x8x128xi32>
    %27 = arith.cmpi eq, %3, %26 : vector<2x8x128xi32>
    %28 = arith.extui %27 : vector<2x8x128xi1> to vector<2x8x128xi32>
    %29 = arith.sitofp %28 : vector<2x8x128xi32> to vector<2x8x128xf32>
    %30 = arith.mulf %29, %23 : vector<2x8x128xf32>
    %31 = arith.addf %19, %30 : vector<2x8x128xf32>
    %cst_26 = arith.constant 1.825000e-01 : f32
    %32 = vector.broadcast %cst_26 : f32 to vector<2x8x128xf32>
    %33 = arith.mulf %29, %32 : vector<2x8x128xf32>
    %34 = arith.addf %20, %33 : vector<2x8x128xf32>
    %c0_27 = arith.constant 0 : index
    %c1_28 = arith.constant 1 : index
    %c0_29 = arith.constant 0 : index
    %c0_30 = arith.constant 0 : index
    %35 = vector.load %arg3[%c0_27, %c1_28, %c0_29, %c0_30] : memref<2x5x8x128xf32, #tpu.memory_space<vmem>>, vector<2x1x8x128xf32>
    %36 = vector.shape_cast %35 : vector<2x1x8x128xf32> to vector<2x8x128xf32>
    %37 = arith.subf %36, %17 : vector<2x8x128xf32>
    %38 = math.exp %37 : vector<2x8x128xf32>
    %39 = arith.addf %25, %38 : vector<2x8x128xf32>
    %c1_i32 = arith.constant 1 : i32
    %40 = vector.broadcast %c1_i32 : i32 to vector<2x8x128xi32>
    %41 = arith.cmpi eq, %3, %40 : vector<2x8x128xi32>
    %42 = arith.extui %41 : vector<2x8x128xi1> to vector<2x8x128xi32>
    %43 = arith.sitofp %42 : vector<2x8x128xi32> to vector<2x8x128xf32>
    %44 = arith.mulf %43, %37 : vector<2x8x128xf32>
    %45 = arith.addf %31, %44 : vector<2x8x128xf32>
    %cst_31 = arith.constant 1.500000e-01 : f32
    %46 = vector.broadcast %cst_31 : f32 to vector<2x8x128xf32>
    %47 = arith.mulf %43, %46 : vector<2x8x128xf32>
    %48 = arith.addf %34, %47 : vector<2x8x128xf32>
    %c0_32 = arith.constant 0 : index
    %c2_33 = arith.constant 2 : index
    %c0_34 = arith.constant 0 : index
    %c0_35 = arith.constant 0 : index
    %49 = vector.load %arg3[%c0_32, %c2_33, %c0_34, %c0_35] : memref<2x5x8x128xf32, #tpu.memory_space<vmem>>, vector<2x1x8x128xf32>
    %50 = vector.shape_cast %49 : vector<2x1x8x128xf32> to vector<2x8x128xf32>
    %51 = arith.subf %50, %17 : vector<2x8x128xf32>
    %52 = math.exp %51 : vector<2x8x128xf32>
    %53 = arith.addf %39, %52 : vector<2x8x128xf32>
    %c2_i32 = arith.constant 2 : i32
    %54 = vector.broadcast %c2_i32 : i32 to vector<2x8x128xi32>
    %55 = arith.cmpi eq, %3, %54 : vector<2x8x128xi32>
    %56 = arith.extui %55 : vector<2x8x128xi1> to vector<2x8x128xi32>
    %57 = arith.sitofp %56 : vector<2x8x128xi32> to vector<2x8x128xf32>
    %58 = arith.mulf %57, %51 : vector<2x8x128xf32>
    %59 = arith.addf %45, %58 : vector<2x8x128xf32>
    %cst_36 = arith.constant 2.350000e-01 : f32
    %60 = vector.broadcast %cst_36 : f32 to vector<2x8x128xf32>
    %61 = arith.mulf %57, %60 : vector<2x8x128xf32>
    %62 = arith.addf %48, %61 : vector<2x8x128xf32>
    %c0_37 = arith.constant 0 : index
    %c3_38 = arith.constant 3 : index
    %c0_39 = arith.constant 0 : index
    %c0_40 = arith.constant 0 : index
    %63 = vector.load %arg3[%c0_37, %c3_38, %c0_39, %c0_40] : memref<2x5x8x128xf32, #tpu.memory_space<vmem>>, vector<2x1x8x128xf32>
    %64 = vector.shape_cast %63 : vector<2x1x8x128xf32> to vector<2x8x128xf32>
    %65 = arith.subf %64, %17 : vector<2x8x128xf32>
    %66 = math.exp %65 : vector<2x8x128xf32>
    %67 = arith.addf %53, %66 : vector<2x8x128xf32>
    %c3_i32 = arith.constant 3 : i32
    %68 = vector.broadcast %c3_i32 : i32 to vector<2x8x128xi32>
    %69 = arith.cmpi eq, %3, %68 : vector<2x8x128xi32>
    %70 = arith.extui %69 : vector<2x8x128xi1> to vector<2x8x128xi32>
    %71 = arith.sitofp %70 : vector<2x8x128xi32> to vector<2x8x128xf32>
    %72 = arith.mulf %71, %65 : vector<2x8x128xf32>
    %73 = arith.addf %59, %72 : vector<2x8x128xf32>
    %cst_41 = arith.constant 2.375000e-01 : f32
    %74 = vector.broadcast %cst_41 : f32 to vector<2x8x128xf32>
    %75 = arith.mulf %71, %74 : vector<2x8x128xf32>
    %76 = arith.addf %62, %75 : vector<2x8x128xf32>
    %c0_42 = arith.constant 0 : index
    %c4_43 = arith.constant 4 : index
    %c0_44 = arith.constant 0 : index
    %c0_45 = arith.constant 0 : index
    %77 = vector.load %arg3[%c0_42, %c4_43, %c0_44, %c0_45] : memref<2x5x8x128xf32, #tpu.memory_space<vmem>>, vector<2x1x8x128xf32>
    %78 = vector.shape_cast %77 : vector<2x1x8x128xf32> to vector<2x8x128xf32>
    %79 = arith.subf %78, %17 : vector<2x8x128xf32>
    %80 = math.exp %79 : vector<2x8x128xf32>
    %81 = arith.addf %67, %80 : vector<2x8x128xf32>
    %c4_i32 = arith.constant 4 : i32
    %82 = vector.broadcast %c4_i32 : i32 to vector<2x8x128xi32>
    %83 = arith.cmpi eq, %3, %82 : vector<2x8x128xi32>
    %84 = arith.extui %83 : vector<2x8x128xi1> to vector<2x8x128xi32>
    %85 = arith.sitofp %84 : vector<2x8x128xi32> to vector<2x8x128xf32>
    %86 = arith.mulf %85, %79 : vector<2x8x128xf32>
    %87 = arith.addf %73, %86 : vector<2x8x128xf32>
    %cst_46 = arith.constant 1.950000e-01 : f32
    %88 = vector.broadcast %cst_46 : f32 to vector<2x8x128xf32>
    %89 = arith.mulf %85, %88 : vector<2x8x128xf32>
    %90 = arith.addf %76, %89 : vector<2x8x128xf32>
    %91 = math.log %81 : vector<2x8x128xf32>
    %92 = arith.subf %87, %91 : vector<2x8x128xf32>
    %93 = math.exp %92 : vector<2x8x128xf32>
    %cst_47 = arith.constant 1.000000e-10 : f32
    %94 = vector.broadcast %cst_47 : f32 to vector<2x8x128xf32>
    %95 = arith.addf %93, %94 : vector<2x8x128xf32>
    %96 = math.log %95 : vector<2x8x128xf32>
    %cst_48 = arith.constant 1.000000e+00 : f32
    %97 = vector.broadcast %cst_48 : f32 to vector<2x8x128xf32>
    %98 = arith.subf %97, %95 : vector<2x8x128xf32>
    %cst_49 = arith.constant 1.000000e+00 : f32
    %99 = vector.broadcast %cst_49 : f32 to vector<2x8x128xf32>
    %100 = arith.mulf %99, %98 : vector<2x8x128xf32>
    %101 = arith.mulf %100, %98 : vector<2x8x128xf32>
    %102 = arith.mulf %90, %101 : vector<2x8x128xf32>
    %cst_50 = arith.constant 0.000000e+00 : f32
    %103 = vector.broadcast %cst_50 : f32 to vector<2x8x128xf32>
    %104 = arith.subf %103, %102 : vector<2x8x128xf32>
    %105 = arith.mulf %104, %96 : vector<2x8x128xf32>
    %106 = vector.extract_strided_slice %105 {offsets = [0, 0, 0], sizes = [1, 8, 128], strides = [1, 1, 1]} : vector<2x8x128xf32> to vector<1x8x128xf32>
    %107 = vector.shape_cast %106 : vector<1x8x128xf32> to vector<8x128xf32>
    %108 = vector.extract_strided_slice %105 {offsets = [1, 0, 0], sizes = [1, 8, 128], strides = [1, 1, 1]} : vector<2x8x128xf32> to vector<1x8x128xf32>
    %109 = vector.shape_cast %108 : vector<1x8x128xf32> to vector<8x128xf32>
    %110 = arith.addf %107, %109 : vector<8x128xf32>
    %c0_51 = arith.constant 0 : index
    %c0_52 = arith.constant 0 : index
    %c0_53 = arith.constant 0 : index
    %c0_54 = arith.constant 0 : index
    %111 = vector.load %arg5[%c0_51, %c0_52, %c0_53, %c0_54] : memref<1x1x8x128xf32, #tpu.memory_space<vmem>>, vector<1x1x8x128xf32>
    %112 = vector.shape_cast %111 : vector<1x1x8x128xf32> to vector<8x128xf32>
    %113 = arith.addf %112, %110 : vector<8x128xf32>
    %c0_55 = arith.constant 0 : index
    %c0_56 = arith.constant 0 : index
    %c0_57 = arith.constant 0 : index
    %c0_58 = arith.constant 0 : index
    %114 = vector.load %arg5[%c0_55, %c0_56, %c0_57, %c0_58] : memref<1x1x8x128xf32, #tpu.memory_space<vmem>>, vector<1x1x8x128xf32>
    %115 = vector.shape_cast %114 : vector<1x1x8x128xf32> to vector<8x128xf32>
    %116 = vector.shape_cast %113 : vector<8x128xf32> to vector<1x1x8x128xf32>
    tpu.vector_store %arg5[%c0_55, %c0_56, %c0_57, %c0_58], %116 {strides = array<i32>} : memref<1x1x8x128xf32, #tpu.memory_space<vmem>>, vector<1x1x8x128xf32>,
    return
  }
  func.func @transform_0(%arg0: i32, %arg1: i32, %arg2: i32) -> (i32, i32, i32, i32) {
    %c1_i32 = arith.constant 1 : i32
    %0 = arith.muli %arg1, %c1_i32 : i32
    %1 = arith.addi %0, %arg2 : i32
    %c0_i32 = arith.constant 0 : i32
    %c0_i32_0 = arith.constant 0 : i32
    %c0_i32_1 = arith.constant 0 : i32
    return %arg0, %c0_i32, %1, %c0_i32_0 : i32, i32, i32, i32
  }
  func.func @transform_1(%arg0: i32, %arg1: i32, %arg2: i32) -> (i32, i32, i32) {
    %c1_i32 = arith.constant 1 : i32
    %0 = arith.muli %arg1, %c1_i32 : i32
    %1 = arith.addi %0, %arg2 : i32
    %c0_i32 = arith.constant 0 : i32
    %c0_i32_0 = arith.constant 0 : i32
    return %arg0, %1, %c0_i32 : i32, i32, i32
  }
  func.func @transform_2(%arg0: i32, %arg1: i32, %arg2: i32) -> (i32, i32, i32, i32) {
    %c0_i32 = arith.constant 0 : i32
    %c0_i32_0 = arith.constant 0 : i32
    %c0_i32_1 = arith.constant 0 : i32
    return %arg0, %arg1, %c0_i32, %c0_i32_0 : i32, i32, i32, i32
  }
}

</mosaic_0001>

<llo_original>
// kernel: tpu_custom_call.1
$region0: #{tpu_custom_call.1}
  #allocation0 [shape = 'u32[]', space=smem, size = 0x4, offset = 0x4, fixed_abs, tag = 'smem constant byte address 0x4 - core index']
  #allocation1 [shape = 'u32[144,128]{1,0:T(1,128)}', space=vmem, size = 0x12000, scoped, tag = 'internal scratch']
  %s0 = inlined_call_operand.hbm [shape: f32[2,5,8,128], index: 0, kind: input, shape index: {}]
  %s1 = inlined_call_operand.hbm [shape: s32[2,8,128], index: 1, kind: input, shape index: {}]
  %s2 = inlined_call_operand.hbm [shape: f32[1,1,8,128], index: 2, kind: output, shape index: {}]
  %s3 = sld [smem:[#allocation0]]
  $region30: #{tpu_custom_call.1} parent=0
    _
  %s5 = ssub.s32 1, %s3
  %s6 = scalar_select 0, %s5, %s3
  $region1: #{tpu_custom_call.1} parent=0
    #allocation2 [shape = 'u8[40960]{0}', space=vmem, size = 0xa000, scoped, tag = 'input window, operand 0, single buffered']
    #allocation3 [shape = 's32[1]{0}', space=sflag, size = 0x4, scoped, tag = 'scoped memory for tpu_custom_call.1']
    #allocation4 [shape = 's32[1]{0}', space=sflag, size = 0x4, scoped, tag = 'scoped memory for tpu_custom_call.1']
    #allocation5 [shape = 'u8[8192]{0}', space=vmem, size = 0x2000, scoped, tag = 'input window, operand 1, single buffered']
    #allocation6 [shape = 's32[1]{0}', space=sflag, size = 0x4, scoped, tag = 'scoped memory for tpu_custom_call.1']
    #allocation7 [shape = 'u8[4096]{0}', space=vmem, size = 0x1000, scoped, tag = 'output window, operand 0, single buffered']
    %7 = vsyncpa [#allocation3], 0
    %8 = vsyncpa [#allocation6], 0
    %9 = vsyncpa [#allocation4], 0
    // Predicated region
    $region2: #{tpu_custom_call.1} parent=1 // pred_check
      _
    $region3: #{tpu_custom_call.1} parent=1 // pred_check_branch
      %11 = sbr.rel (0) target = $region5
    $region4: #{tpu_custom_call.1} parent=1 // pred_region
      %s12 = sadd.s32 0, 0
      %s14 = ssub.s32 1280, 1280
      %15 = vsyncadd [#allocation3], %s14
      %s16 = smul.addr %s12, 128
      %s17 = scalar_lea.hbm %s0, %s16
      %s18 = sshll.u32 [#allocation2], 4
      %s19 = int_to_ptr.vmem [resolvable:$true] %s18
      %24 = dma.hbm_to_vmem [thread:$0]  %s17, 1280, %s19, [#allocation3], 128, 128, 8
    $region5: #{tpu_custom_call.1} parent=1 // pred_fallthru
      _
    // Predicated region
    $region6: #{tpu_custom_call.1} parent=1 // pred_check
      _
    $region7: #{tpu_custom_call.1} parent=1 // pred_check_branch
      %26 = sbr.rel (0) target = $region9
    $region8: #{tpu_custom_call.1} parent=1 // pred_region
      %s27 = sadd.s32 0, 0
      %s29 = ssub.s32 256, 256
      %30 = vsyncadd [#allocation6], %s29
      %s31 = smul.addr %s27, 128
      %s32 = scalar_lea.hbm %s1, %s31
      %s33 = sshll.u32 [#allocation5], 4
      %s34 = int_to_ptr.vmem [resolvable:$true] %s33
      %39 = dma.hbm_to_vmem [thread:$0]  %s32, 256, %s34, [#allocation6], 128, 128, 8
    $region9: #{tpu_custom_call.1} parent=1 // pred_fallthru
      _
    // Predicated region
    $region10: #{tpu_custom_call.1} parent=1 // pred_check
      _
    $region11: #{tpu_custom_call.1} parent=1 // pred_check_branch
      %41 = sbr.rel (0) target = $region13
    $region12: #{tpu_custom_call.1} parent=1 // pred_region
      %42 = dma.done [#allocation3], 1280
    $region13: #{tpu_custom_call.1} parent=1 // pred_fallthru
      _
    // Predicated region
    $region14: #{tpu_custom_call.1} parent=1 // pred_check
      _
    $region15: #{tpu_custom_call.1} parent=1 // pred_check_branch
      %44 = sbr.rel (0) target = $region17
    $region16: #{tpu_custom_call.1} parent=1 // pred_region
      %45 = dma.done [#allocation6], 256
    $region17: #{tpu_custom_call.1} parent=1 // pred_fallthru
      _
    %s46 = sadd.s32 0, 0
    %s47 = sadd.s32 0, 0
    %p48 = scmp.eq.s32.totalorder 0, 0
    // Predicated region
    $region18: #{tpu_custom_call.1} parent=1 // pred_check
      %p49 = pneg %p48
    $region19: #{tpu_custom_call.1} parent=1 // pred_check_branch
      %51 = sbr.rel (%p49) target = $region21
    $region20: #{tpu_custom_call.1} parent=1 // pred_region
      %52 = vst [vmem:[#allocation7] sm:$0xff] 0.0
    $region21: #{tpu_custom_call.1} parent=1 // pred_fallthru
      _
    %v53 = vld [vmem:[#allocation5] sm:$0xff]
    %v54 = vld [vmem:[#allocation5 + $0x8] sm:$0xff]
    %v55 = vld [vmem:[#allocation2] sm:$0xff]
    %v56 = vld [vmem:[#allocation2 + $0x28] sm:$0xff]
    %s57 = scalar_lea.vmem [#allocation2], 8
    %v58 = vld [vmem:[%s57] sm:$0xff]
    %v59 = vld [vmem:[%s57 + $0x28] sm:$0xff]
    %v60 = vmax.f32 %v55, %v58
    %v61 = vmax.f32 %v56, %v59
    %s62 = scalar_lea.vmem [#allocation2], 16
    %v63 = vld [vmem:[%s62] sm:$0xff]
    %v64 = vld [vmem:[%s62 + $0x28] sm:$0xff]
    %v65 = vmax.f32 %v60, %v63
    %v66 = vmax.f32 %v61, %v64
    %s67 = scalar_lea.vmem [#allocation2], 24
    %v68 = vld [vmem:[%s67] sm:$0xff]
    %v69 = vld [vmem:[%s67 + $0x28] sm:$0xff]
    %v70 = vmax.f32 %v65, %v68
    %v71 = vmax.f32 %v66, %v69
    %s72 = scalar_lea.vmem [#allocation2], 32
    %v73 = vld [vmem:[%s72] sm:$0xff]
    %v74 = vld [vmem:[%s72 + $0x28] sm:$0xff]
    %v75 = vmax.f32 %v70, %v73
    %v76 = vmax.f32 %v71, %v74
    %v77 = vsub.f32 %v55, %v75
    %v78 = vsub.f32 %v56, %v76
    %v79 = vmul.f32 %v77, 1.442695
    %v80 = vpow.pop %v79
    %v81 = vmul.f32 %v78, 1.442695
    %v82 = vpow.pop %v81
    %v83 = vadd.f32 %v80, 0.0
    %v84 = vadd.f32 %v82, 0.0
    %vm85 = vcmp.eq.s32.totalorder %v53, 0
    %vm86 = vcmp.eq.s32.totalorder %v54, 0
    %v87 = vsel %vm85, 1, 0
    %v88 = vsel %vm86, 1, 0
    %v89 = vcvt.s32.f32 %v87
    %v90 = vcvt.s32.f32 %v88
    %v91 = vmul.f32 %v89, %v77
    %v92 = vmul.f32 %v90, %v78
    %v93 = vadd.f32 %v91, 0.0
    %v94 = vadd.f32 %v92, 0.0
    %v95 = vmul.f32 %v89, 0.1825
    %v96 = vmul.f32 %v90, 0.1825
    %v97 = vadd.f32 %v95, 0.0
    %v98 = vadd.f32 %v96, 0.0
    %v99 = vsub.f32 %v58, %v75
    %v100 = vsub.f32 %v59, %v76
    %v101 = vmul.f32 %v99, 1.442695
    %v102 = vpow.pop %v101
    %v103 = vmul.f32 %v100, 1.442695
    %v104 = vpow.pop %v103
    %v105 = vadd.f32 %v83, %v102
    %v106 = vadd.f32 %v84, %v104
    %vm107 = vcmp.eq.s32.totalorder %v53, 1
    %vm108 = vcmp.eq.s32.totalorder %v54, 1
    %v109 = vsel %vm107, 1, 0
    %v110 = vsel %vm108, 1, 0
    %v111 = vcvt.s32.f32 %v109
    %v112 = vcvt.s32.f32 %v110
    %v113 = vmul.f32 %v111, %v99
    %v114 = vmul.f32 %v112, %v100
    %v115 = vadd.f32 %v93, %v113
    %v116 = vadd.f32 %v94, %v114
    %v117 = vmul.f32 %v111, 0.15
    %v118 = vmul.f32 %v112, 0.15
    %v119 = vadd.f32 %v97, %v117
    %v120 = vadd.f32 %v98, %v118
    %v121 = vsub.f32 %v63, %v75
    %v122 = vsub.f32 %v64, %v76
    %v123 = vmul.f32 %v121, 1.442695
    %v124 = vpow.pop %v123
    %v125 = vmul.f32 %v122, 1.442695
    %v126 = vpow.pop %v125
    %v127 = vadd.f32 %v105, %v124
    %v128 = vadd.f32 %v106, %v126
    %vm129 = vcmp.eq.s32.totalorder %v53, 2
    %vm130 = vcmp.eq.s32.totalorder %v54, 2
    %v131 = vsel %vm129, 1, 0
    %v132 = vsel %vm130, 1, 0
    %v133 = vcvt.s32.f32 %v131
    %v134 = vcvt.s32.f32 %v132
    %v135 = vmul.f32 %v133, %v121
    %v136 = vmul.f32 %v134, %v122
    %v137 = vadd.f32 %v115, %v135
    %v138 = vadd.f32 %v116, %v136
    %v139 = vmul.f32 %v133, 0.235
    %v140 = vmul.f32 %v134, 0.235
    %v141 = vadd.f32 %v119, %v139
    %v142 = vadd.f32 %v120, %v140
    %v143 = vsub.f32 %v68, %v75
    %v144 = vsub.f32 %v69, %v76
    %v145 = vmul.f32 %v143, 1.442695
    %v146 = vpow.pop %v145
    %v147 = vmul.f32 %v144, 1.442695
    %v148 = vpow.pop %v147
    %v149 = vadd.f32 %v127, %v146
    %v150 = vadd.f32 %v128, %v148
    %vm151 = vcmp.eq.s32.totalorder %v53, 3
    %vm152 = vcmp.eq.s32.totalorder %v54, 3
    %v153 = vsel %vm151, 1, 0
    %v154 = vsel %vm152, 1, 0
    %v155 = vcvt.s32.f32 %v153
    %v156 = vcvt.s32.f32 %v154
    %v157 = vmul.f32 %v155, %v143
    %v158 = vmul.f32 %v156, %v144
    %v159 = vadd.f32 %v137, %v157
    %v160 = vadd.f32 %v138, %v158
    %v161 = vmul.f32 %v155, 0.2375
    %v162 = vmul.f32 %v156, 0.2375
    %v163 = vadd.f32 %v141, %v161
    %v164 = vadd.f32 %v142, %v162
    %v165 = vsub.f32 %v73, %v75
    %v166 = vsub.f32 %v74, %v76
    %v167 = vmul.f32 %v165, 1.442695
    %v168 = vpow.pop %v167
    %v169 = vmul.f32 %v166, 1.442695
    %v170 = vpow.pop %v169
    %v171 = vadd.f32 %v149, %v168
    %v172 = vadd.f32 %v150, %v170
    %vm173 = vcmp.eq.s32.totalorder %v53, 4
    %vm174 = vcmp.eq.s32.totalorder %v54, 4
    %v175 = vsel %vm173, 1, 0
    %v176 = vsel %vm174, 1, 0
    %v177 = vcvt.s32.f32 %v175
    %v178 = vcvt.s32.f32 %v176
    %v179 = vmul.f32 %v177, %v165
    %v180 = vmul.f32 %v178, %v166
    %v181 = vadd.f32 %v159, %v179
    %v182 = vadd.f32 %v160, %v180
    %v183 = vmul.f32 %v177, 0.195
    %v184 = vmul.f32 %v178, 0.195
    %v185 = vadd.f32 %v163, %v183
    %v186 = vadd.f32 %v164, %v184
    %v187 = vlog2.pop %v171
    %v188 = vmul.f32 %v187, 0.6931472
    %v189 = vlog2.pop %v172
    %v190 = vmul.f32 %v189, 0.6931472
    %v191 = vsub.f32 %v181, %v188
    %v192 = vsub.f32 %v182, %v190
    %v193 = vmul.f32 %v191, 1.442695
    %v194 = vpow.pop %v193
    %v195 = vmul.f32 %v192, 1.442695
    %v196 = vpow.pop %v195
    %v197 = vadd.f32 %v194, 1e-10
    %v198 = vadd.f32 %v196, 1e-10
    %v199 = vlog2.pop %v197
    %v200 = vmul.f32 %v199, 0.6931472
    %v201 = vlog2.pop %v198
    %v202 = vmul.f32 %v201, 0.6931472
    %v203 = vsub.f32 1.0, %v197
    %v204 = vsub.f32 1.0, %v198
    %v205 = vmul.f32 %v203, %v203
    %v206 = vmul.f32 %v204, %v204
    %v207 = vmul.f32 %v185, %v205
    %v208 = vmul.f32 %v186, %v206
    %v209 = vsub.f32 0.0, %v207
    %v210 = vsub.f32 0.0, %v208
    %v211 = vmul.f32 %v209, %v200
    %v212 = vmul.f32 %v210, %v202
    %v213 = vadd.f32 %v211, %v212
    %v214 = vld [vmem:[#allocation7] sm:$0xff]
    %v215 = vadd.f32 %v214, %v213
    %216 = vst [vmem:[#allocation7] sm:$0xff] %v215
    // Predicated region
    $region22: #{tpu_custom_call.1} parent=1 // pred_check
      _
    $region23: #{tpu_custom_call.1} parent=1 // pred_check_branch
      %218 = sbr.rel (0) target = $region25
    $region24: #{tpu_custom_call.1} parent=1 // pred_region
      %s220 = ssub.s32 128, 128
      %221 = vsyncadd [#allocation4], %s220
      %s223 = sshll.u32 [#allocation7], 4
      %s224 = int_to_ptr.vmem [resolvable:$true] %s223
      %226 = dma.vmem_to_hbm [thread:$0]  %s224, 128, %s2, [#allocation4]
    $region25: #{tpu_custom_call.1} parent=1 // pred_fallthru
      _
    // Predicated region
    $region26: #{tpu_custom_call.1} parent=1 // pred_check
      _
    $region27: #{tpu_custom_call.1} parent=1 // pred_check_branch
      %228 = sbr.rel (0) target = $region29
    $region28: #{tpu_custom_call.1} parent=1 // pred_region
      %229 = dma.done [#allocation4], 128
    $region29: #{tpu_custom_call.1} parent=1 // pred_fallthru
      _
    %230 = vsyncpa [#allocation3], 1
    %231 = vsyncpa [#allocation6], 1
    %232 = vsyncpa [#allocation4], 1

</llo_original>
